<compile_context>
chip_gen: v7x
topology: tpu7x:2x2x1
jax: 0.10.0
libtpu: 0.0.40
codegen_flags: <defaults>
</compile_context>

<pallas_src>
import functools

import jax
import jax.numpy as jnp
from jax import lax
from jax.experimental import pallas as pl
from jax.experimental.pallas import tpu as pltpu


# --------------------------------------------------------------------------
# helpers
# --------------------------------------------------------------------------
def _pick_hw_block(hw, target=2048):
    """Largest HW tile <= target (multiple of 128 if HW is tiled)."""
    if hw <= target:
        return hw
    blk = (target // 128) * 128
    while blk >= 128:
        if hw % blk == 0:
            return blk
        blk -= 128
    return hw


def _im2col3x3_cfirst(x_nchw):
    """(B, C, H, W) -> (B, C*9, H*W) with (c, kh, kw) ordering (matches
    PyTorch conv weight .reshape(out, C*3*3))."""
    B, C, H, W = x_nchw.shape
    xp = jnp.pad(x_nchw, ((0, 0), (0, 0), (1, 1), (1, 1)))
    cols = [xp[:, :, kh:kh + H, kw:kw + W] for kh in range(3) for kw in range(3)]
    patches = jnp.stack(cols, axis=2)            # (B, C, 9, H, W)
    return patches.reshape(B, C * 9, H * W)


# --------------------------------------------------------------------------
# Small generic (M,K)@(K,N)+bias kernel (used only for the tiny filter linears)
# --------------------------------------------------------------------------
def _mm_bias_kernel(x_ref, w_ref, b_ref, o_ref):
    o_ref[...] = (jnp.dot(x_ref[...], w_ref[...], preferred_element_type=jnp.float32)
                  + b_ref[...])


def matmul_bias(x, w, b2d):
    M, K = x.shape
    N = w.shape[1]
    return pl.pallas_call(
        _mm_bias_kernel,
        grid=(1,),
        out_shape=jax.ShapeDtypeStruct((M, N), jnp.float32),
        in_specs=[pl.BlockSpec((M, K), lambda i: (0, 0)),
                  pl.BlockSpec((K, N), lambda i: (0, 0)),
                  pl.BlockSpec((1, N), lambda i: (0, 0))],
        out_specs=pl.BlockSpec((M, N), lambda i: (0, 0)),
    )(x.astype(jnp.float32), w.astype(jnp.float32), b2d.astype(jnp.float32))


# --------------------------------------------------------------------------
# Language encoder front end: embedding -> MLP+ReLU -> fwd+bwd LSTM gate
# projections, fused into a single pallas_call (one lane-dense 8H output).
# --------------------------------------------------------------------------
def _lang_gates_kernel(emb_ref, mlp_w_ref, mlp_b_ref, wih_ref, bih_ref, gates_ref):
    mlp = jnp.dot(emb_ref[...], mlp_w_ref[...], preferred_element_type=jnp.float32)
    mlp = jnp.maximum(mlp + mlp_b_ref[...], 0.0)
    gates_ref[...] = (jnp.dot(mlp, wih_ref[...], preferred_element_type=jnp.float32)
                      + bih_ref[...])


def lang_gates(emb2d, mlp_w, mlp_b2d, w_ih_cat, b_cat2d):
    M, E = emb2d.shape
    wv = mlp_w.shape[1]
    N = w_ih_cat.shape[1]
    return pl.pallas_call(
        _lang_gates_kernel,
        grid=(1,),
        out_shape=jax.ShapeDtypeStruct((M, N), jnp.float32),
        in_specs=[pl.BlockSpec((M, E), lambda i: (0, 0)),
                  pl.BlockSpec((E, wv), lambda i: (0, 0)),
                  pl.BlockSpec((1, wv), lambda i: (0, 0)),
                  pl.BlockSpec((wv, N), lambda i: (0, 0)),
                  pl.BlockSpec((1, N), lambda i: (0, 0))],
        out_specs=pl.BlockSpec((M, N), lambda i: (0, 0)),
    )(emb2d.astype(jnp.float32), mlp_w.astype(jnp.float32), mlp_b2d.astype(jnp.float32),
      w_ih_cat.astype(jnp.float32), b_cat2d.astype(jnp.float32))


def _lstm_direction(x_gates, lengths, w_hh, hidden, reverse):
    # x_gates: (B, L, 4H), already contains x@W_ih.T + b_ih + b_hh
    B, L, _ = x_gates.shape
    xs_g = jnp.moveaxis(x_gates, 1, 0)                 # (L, B, 4H)
    ts = jnp.arange(L)
    if reverse:
        xs_g = xs_g[::-1]
        ts = ts[::-1]

    def step(carry, xt):
        t, g_in = xt
        h, c = carry
        g = g_in + h @ w_hh.T
        i = jax.nn.sigmoid(g[:, 0 * hidden:1 * hidden])
        f = jax.nn.sigmoid(g[:, 1 * hidden:2 * hidden])
        gg = jnp.tanh(g[:, 2 * hidden:3 * hidden])
        o = jax.nn.sigmoid(g[:, 3 * hidden:4 * hidden])
        c_new = f * c + i * gg
        h_new = o * jnp.tanh(c_new)
        m = (t < lengths)[:, None]                      # packed-sequence masking
        return (jnp.where(m, h_new, h), jnp.where(m, c_new, c)), None

    init = (jnp.zeros((B, hidden), jnp.float32), jnp.zeros((B, hidden), jnp.float32))
    (h, _), _ = lax.scan(step, init, (ts, xs_g))
    return h


def lang_encoder(params, labels, hidden_size):
    B, L = labels.shape
    lengths = (labels != 0).sum(axis=1)                 # variable_lengths
    emb = jnp.take(params['emb'], labels, axis=0)       # nn.Embedding
    # input_dropout(p=0) -> identity
    E = emb.shape[-1]
    H = hidden_size

    # fwd and bwd input-gate projections concatenated along N (lane-dense 8H)
    w_ih_cat = jnp.concatenate([params['w_ih_f'].T, params['w_ih_b'].T], axis=1)
    b_cat = jnp.concatenate([params['b_ih_f'] + params['b_hh_f'],
                             params['b_ih_b'] + params['b_hh_b']]).reshape(1, -1)
    gates = lang_gates(emb.reshape(B * L, E), params['mlp_w'],
                       params['mlp_b'].reshape(1, -1), w_ih_cat, b_cat)
    gates = gates.reshape(B, L, 8 * H)
    gates_f, gates_b = gates[..., :4 * H], gates[..., 4 * H:]

    # tiny sequential recurrence: plain JAX glue (no Pallas benefit at B=2)
    h_f = _lstm_direction(gates_f, lengths, params['w_hh_f'], H, reverse=False)
    h_b = _lstm_direction(gates_b, lengths, params['w_hh_b'], H, reverse=True)
    hidden = jnp.concatenate([h_f, h_b], axis=-1)       # (B, 2H)

    # filter1/filter2/filter3/reason_filter as one (2H, 256) matmul
    filt = matmul_bias(hidden, params['filt_w'], params['filt_b'].reshape(1, -1))
    f1, f2, f3, reason_vec = jnp.split(filt, 4, axis=1)
    return hidden, f1, f2, f3, reason_vec


# --------------------------------------------------------------------------
# Fused attention-map kernel: per (batch, HW-tile):
#   att  = (c1*f1 + c2*f2 + c3*f3) / 3            (never written to HBM)
#   obj  = W_obj @ att + b_obj
#   hm   = clamped_sigmoid(W_top @ att + b_top)
# W_obj and W_top are stacked into one (ncls+1, C) weight -> a single dot.
# --------------------------------------------------------------------------
def _fusion_kernel(c_ref, f_ref, w_ref, b_ref, obj_ref, hm_ref, *, C, ncls):
    prod = c_ref[0] * f_ref[0]                                   # (3C, hw)
    att = (prod[:C] + prod[C:2 * C] + prod[2 * C:3 * C]) * (1.0 / 3.0)
    comb = (jnp.dot(w_ref[...], att.astype(jnp.bfloat16),
                    preferred_element_type=jnp.float32) + b_ref[...])
    obj_ref[0] = comb[:ncls]
    # CenterNet-style _sigmoid (clamped sigmoid); GaranAttention stubbed as identity.
    hm_ref[0] = jnp.clip(jax.nn.sigmoid(comb[ncls:ncls + 1]), 1e-4, 1.0 - 1e-4)


def fuse_and_project(cstack, fstack, w_cat, b_cat, ncls, hw_blk):
    B, C3, HW = cstack.shape
    C = C3 // 3
    n_hw = HW // hw_blk
    return pl.pallas_call(
        functools.partial(_fusion_kernel, C=C, ncls=ncls),
        grid=(B, n_hw),
        out_shape=(jax.ShapeDtypeStruct((B, ncls, HW), jnp.float32),
                   jax.ShapeDtypeStruct((B, 1, HW), jnp.float32)),
        in_specs=[pl.BlockSpec((1, C3, hw_blk), lambda b, j: (b, 0, j)),
                  pl.BlockSpec((1, C3, 1), lambda b, j: (b, 0, 0)),
                  pl.BlockSpec((ncls + 1, C), lambda b, j: (0, 0)),
                  pl.BlockSpec((ncls + 1, 1), lambda b, j: (0, 0))],
        out_specs=(pl.BlockSpec((1, ncls, hw_blk), lambda b, j: (b, 0, j)),
                   pl.BlockSpec((1, 1, hw_blk), lambda b, j: (b, 0, j))),
        compiler_params=pltpu.CompilerParams(
            dimension_semantics=("parallel", "parallel")),
    )(cstack, fstack, w_cat.astype(jnp.bfloat16), b_cat.astype(jnp.float32))


# --------------------------------------------------------------------------
# All heads fused: Conv2d(C, head_conv, 3, pad=1) + ReLU + Conv2d(head_conv,
# ncls, 1) for every head in ONE kernel.  Computed as
#   h1  = relu(W1_cat(3*HC, C*9)   @ patches(C*9, hw) + b1)   [VMEM scratch]
#   out =       W2_blockdiag(S, 3*HC) @ h1          + b2
# so the output last dim is HW (lane-dense) and h1 never touches HBM.
# --------------------------------------------------------------------------
def _heads_kernel(p_ref, w1_ref, b1_ref, w2_ref, b2_ref, out_ref, h1_ref):
    h1 = (jnp.dot(w1_ref[...], p_ref[0], preferred_element_type=jnp.float32)
          + b1_ref[...])
    h1_ref[...] = jnp.maximum(h1, 0.0).astype(jnp.bfloat16)
    out_ref[0] = (jnp.dot(w2_ref[...], h1_ref[...],
                          preferred_element_type=jnp.float32) + b2_ref[...])


def apply_heads(patches_bf16, w1_cat, b1_cat, w2_blkdiag, b2_cat, hw_blk):
    B, CK, HW = patches_bf16.shape
    HC_total = w1_cat.shape[0]
    S = w2_blkdiag.shape[0]
    n_hw = HW // hw_blk
    return pl.pallas_call(
        _heads_kernel,
        grid=(B, n_hw),
        out_shape=jax.ShapeDtypeStruct((B, S, HW), jnp.float32),
        in_specs=[pl.BlockSpec((1, CK, hw_blk), lambda b, j: (b, 0, j)),
                  pl.BlockSpec((HC_total, CK), lambda b, j: (0, 0)),
                  pl.BlockSpec((HC_total, 1), lambda b, j: (0, 0)),
                  pl.BlockSpec((S, HC_total), lambda b, j: (0, 0)),
                  pl.BlockSpec((S, 1), lambda b, j: (0, 0))],
        out_specs=pl.BlockSpec((1, S, hw_blk), lambda b, j: (b, 0, j)),
        scratch_shapes=[pltpu.VMEM((HC_total, hw_blk), jnp.bfloat16)],
        compiler_params=pltpu.CompilerParams(
            dimension_semantics=("parallel", "parallel")),
    )(patches_bf16, w1_cat.astype(jnp.bfloat16), b1_cat.astype(jnp.float32),
      w2_blkdiag.astype(jnp.bfloat16), b2_cat.astype(jnp.float32))


# --------------------------------------------------------------------------
# DLARef_aux forward (post-backbone part).
# --------------------------------------------------------------------------
def dlaref_aux_forward(params, c1, c2, c3, sentence, *, hidden_size, heads):
    B, C, H, W = c1.shape
    HW = H * W
    hw_blk = _pick_hw_block(HW)

    hidden, f1, f2, f3, reason_vec = lang_encoder(params, sentence, hidden_size)
    assert f1.shape[1] == C  # filter width (64) must match feature channels

    # --- fusion head: stacked features / filters, stacked obj|top weights ---
    cstack = jnp.concatenate([c1, c2, c3], axis=1).reshape(B, 3 * C, HW)
    fstack = jnp.concatenate([f1, f2, f3], axis=1).reshape(B, 3 * C, 1)
    ncls = params['obj_w'].shape[0]
    w_cat = jnp.concatenate([params['obj_w'], params['top_w']], axis=0)   # (ncls+1, C)
    b_cat = jnp.concatenate([params['obj_b'], params['top_b']]).reshape(-1, 1)
    obj_map, center_map = fuse_and_project(cstack, fstack, w_cat, b_cat, ncls, hw_blk)
    # TODO(synk): GaranAttention (self.reason) source not provided; att_map is
    # consumed inside the kernel unchanged and never written back to HBM.

    # --- detection heads: one shared im2col + one fused kernel for all heads ---
    head_names = list(heads.keys())
    HC = params['heads'][head_names[0]]['w1'].shape[0]
    patches = _im2col3x3_cfirst(c1).astype(jnp.bfloat16)          # (B, C*9, HW)
    w1_cat = jnp.concatenate(
        [params['heads'][h]['w1'].reshape(HC, C * 9) for h in head_names], axis=0)
    b1_cat = jnp.concatenate(
        [params['heads'][h]['b1'] for h in head_names]).reshape(-1, 1)
    S = sum(heads[h] for h in head_names)
    w2_blkdiag = jnp.zeros((S, len(head_names) * HC), jnp.float32)
    b2_list, row = [], 0
    for idx, h in enumerate(head_names):
        n = heads[h]
        w2_blkdiag = w2_blkdiag.at[row:row + n, idx * HC:(idx + 1) * HC].set(
            params['heads'][h]['w2'].reshape(n, HC))
        b2_list.append(params['heads'][h]['b2'])
        row += n
    b2_cat = jnp.concatenate(b2_list).reshape(-1, 1)
    head_out = apply_heads(patches, w1_cat, b1_cat, w2_blkdiag, b2_cat, hw_blk)

    z = {}
    z['hm'] = center_map.reshape(B, 1, H, W)
    z['obj_hm'] = obj_map.reshape(B, ncls, H, W)
    row = 0
    for h in head_names:
        # NOTE: as in the PyTorch code, a head named 'hm' overwrites z['hm'].
        n = heads[h]
        z[h] = head_out[:, row:row + n, :].reshape(B, n, H, W)
        row += n
    return [z]


# --------------------------------------------------------------------------
# Deterministic parameter init (shapes follow the module's __init__).
# --------------------------------------------------------------------------
def init_params(key, *, vocab, emb_dim, wv, hidden, C, num_classes, heads, head_conv):
    ks = jax.random.split(key, 32)

    def nrm(k, shape, scale=0.05):
        return (scale * jax.random.normal(k, shape)).astype(jnp.float32)

    p = {
        'emb': nrm(ks[0], (vocab, emb_dim)),
        'mlp_w': nrm(ks[1], (emb_dim, wv)),
        'mlp_b': jnp.zeros((wv,), jnp.float32),
        'w_ih_f': nrm(ks[2], (4 * hidden, wv)),
        'w_hh_f': nrm(ks[3], (4 * hidden, hidden)),
        'b_ih_f': jnp.zeros((4 * hidden,), jnp.float32),
        'b_hh_f': jnp.zeros((4 * hidden,), jnp.float32),
        'w_ih_b': nrm(ks[4], (4 * hidden, wv)),
        'w_hh_b': nrm(ks[5], (4 * hidden, hidden)),
        'b_ih_b': jnp.zeros((4 * hidden,), jnp.float32),
        'b_hh_b': jnp.zeros((4 * hidden,), jnp.float32),
        # filter1 / filter2 / filter3 / reason_filter, each Linear(2H, 64), concatenated
        'filt_w': nrm(ks[6], (2 * hidden, 4 * 64)),
        'filt_b': nrm(ks[7], (4 * 64,), scale=0.01),
        'obj_w': nrm(ks[8], (num_classes, 64)),          # obj_hm: Conv2d(64, num_classes, 1)
        'obj_b': jnp.zeros((num_classes,), jnp.float32),
        'top_w': nrm(ks[9], (1, 64)),                    # top: Conv2d(64, 1, 1)
        'top_b': jnp.zeros((1,), jnp.float32),
    }
    hp = {}
    kidx = 10
    for name, ncls in heads.items():
        hp[name] = {
            'w1': nrm(ks[kidx], (head_conv, C, 3, 3)),
            'b1': jnp.zeros((head_conv,), jnp.float32),
            'w2': nrm(ks[kidx + 1], (ncls, head_conv, 1, 1)),
            'b2': (jnp.full((ncls,), -2.19, jnp.float32) if 'hm' in name
                   else jnp.zeros((ncls,), jnp.float32)),
        }
        kidx += 2
    p['heads'] = hp
    return p


if __name__ == "__main__":
    B, C, H, W = 2, 64, 16, 16        # channels[first_level] = 64 for DLA-34
    L = 8
    vocab, emb_dim, wv, hidden = 50, 16, 16, 32   # 2*hidden = 64 = filter width
    num_classes = 8
    heads = {'hm': 4, 'wh': 2, 'reg': 2}
    head_conv = 32

    key = jax.random.PRNGKey(0)
    kc, ksent, kp = jax.random.split(key, 3)

    c_feats = jax.random.normal(kc, (3, B, C, H, W), jnp.float32)
    c1, c2, c3 = c_feats[0], c_feats[1], c_feats[2]   # y[-1], y[-2], y[-3]

    sentence = jax.random.randint(ksent, (B, L), 1, vocab)
    sentence = sentence.at[1, 5:].set(0).astype(jnp.int32)   # variable lengths (8, 5)

    params = init_params(kp, vocab=vocab, emb_dim=emb_dim, wv=wv, hidden=hidden,
                         C=C, num_classes=num_classes, heads=heads, head_conv=head_conv)

    out = dlaref_aux_forward(params, c1, c2, c3, sentence,
                             hidden_size=hidden, heads=heads)
    jax.block_until_ready(out)

    z = out[0]
    assert z['obj_hm'].shape == (B, num_classes, H, W)
    assert z['wh'].shape == (B, 2, H, W)
    assert z['reg'].shape == (B, 2, H, W)
    assert z['hm'].shape == (B, heads['hm'], H, W)
    print("KERNEL_OK")
</pallas_src>

<mosaic_0001>
module attributes {stable_mosaic.version = 11 : i64} {
  func.func @_lang_gates_kernel(%arg0: i32, %arg1: memref<16x16xf32, #tpu.memory_space<vmem>>, %arg2: memref<16x16xf32, #tpu.memory_space<vmem>>, %arg3: memref<1x16xf32, #tpu.memory_space<vmem>>, %arg4: memref<16x256xf32, #tpu.memory_space<vmem>>, %arg5: memref<1x256xf32, #tpu.memory_space<vmem>>, %arg6: memref<16x256xf32, #tpu.memory_space<vmem>>) attributes {dimension_semantics = [#tpu.dimension_semantics<arbitrary>], iteration_bounds = array<i64: 1>, scalar_prefetch = 0 : i64, scratch_operands = 0 : i64, tpu.core_type = #tpu.core_type<tc>, window_params = [{pipeline_mode = #tpu.pipeline_mode<synchronous>, transform_indices = @transform_0, window_bounds = array<i64: 16, 16>}, {pipeline_mode = #tpu.pipeline_mode<synchronous>, transform_indices = @transform_1, window_bounds = array<i64: 16, 16>}, {pipeline_mode = #tpu.pipeline_mode<synchronous>, transform_indices = @transform_2, window_bounds = array<i64: 1, 16>}, {pipeline_mode = #tpu.pipeline_mode<synchronous>, transform_indices = @transform_3, window_bounds = array<i64: 16, 256>}, {pipeline_mode = #tpu.pipeline_mode<synchronous>, transform_indices = @transform_4, window_bounds = array<i64: 1, 256>}, {pipeline_mode = #tpu.pipeline_mode<synchronous>, transform_indices = @transform_5, window_bounds = array<i64: 16, 256>}]} {
    %c0 = arith.constant 0 : index
    %c0_0 = arith.constant 0 : index
    %0 = vector.load %arg1[%c0, %c0_0] : memref<16x16xf32, #tpu.memory_space<vmem>>, vector<16x16xf32>
    %c0_1 = arith.constant 0 : index
    %c0_2 = arith.constant 0 : index
    %1 = vector.load %arg2[%c0_1, %c0_2] : memref<16x16xf32, #tpu.memory_space<vmem>>, vector<16x16xf32>
    %cst = arith.constant dense<0.000000e+00> : vector<16x16xf32>
    %2 = tpu.matmul %0, %1, %cst {dimension_numbers = #tpu.dot_dimension_numbers<[1], [0], [0], [1], [0, 0, 1, 1], [], []>} : vector<16x16xf32>, vector<16x16xf32>, vector<16x16xf32> -> vector<16x16xf32>
    %c0_3 = arith.constant 0 : index
    %c0_4 = arith.constant 0 : index
    %3 = vector.load %arg3[%c0_3, %c0_4] : memref<1x16xf32, #tpu.memory_space<vmem>>, vector<1x16xf32>
    %4 = vector.broadcast %3 : vector<1x16xf32> to vector<16x16xf32>
    %5 = arith.addf %2, %4 : vector<16x16xf32>
    %cst_5 = arith.constant 0.000000e+00 : f32
    %6 = vector.broadcast %cst_5 : f32 to vector<16x16xf32>
    %7 = arith.maximumf %5, %6 : vector<16x16xf32>
    %c0_6 = arith.constant 0 : index
    %c0_7 = arith.constant 0 : index
    %8 = vector.load %arg4[%c0_6, %c0_7] : memref<16x256xf32, #tpu.memory_space<vmem>>, vector<16x256xf32>
    %cst_8 = arith.constant dense<0.000000e+00> : vector<16x256xf32>
    %9 = tpu.matmul %7, %8, %cst_8 {dimension_numbers = #tpu.dot_dimension_numbers<[1], [0], [0], [1], [0, 0, 1, 1], [], []>} : vector<16x16xf32>, vector<16x256xf32>, vector<16x256xf32> -> vector<16x256xf32>
    %c0_9 = arith.constant 0 : index
    %c0_10 = arith.constant 0 : index
    %10 = vector.load %arg5[%c0_9, %c0_10] : memref<1x256xf32, #tpu.memory_space<vmem>>, vector<1x256xf32>
    %11 = vector.broadcast %10 : vector<1x256xf32> to vector<16x256xf32>
    %12 = arith.addf %9, %11 : vector<16x256xf32>
    %c0_11 = arith.constant 0 : index
    %c0_12 = arith.constant 0 : index
    %13 = vector.load %arg6[%c0_11, %c0_12] : memref<16x256xf32, #tpu.memory_space<vmem>>, vector<16x256xf32>
    tpu.vector_store %arg6[%c0_11, %c0_12], %12 {strides = array<i32>} : memref<16x256xf32, #tpu.memory_space<vmem>>, vector<16x256xf32>,
    return
  }
  func.func @transform_0(%arg0: i32) -> (i32, i32) {
    %c0_i32 = arith.constant 0 : i32
    %c0_i32_0 = arith.constant 0 : i32
    %c0_i32_1 = arith.constant 0 : i32
    return %c0_i32, %c0_i32_0 : i32, i32
  }
  func.func @transform_1(%arg0: i32) -> (i32, i32) {
    %c0_i32 = arith.constant 0 : i32
    %c0_i32_0 = arith.constant 0 : i32
    %c0_i32_1 = arith.constant 0 : i32
    return %c0_i32, %c0_i32_0 : i32, i32
  }
  func.func @transform_2(%arg0: i32) -> (i32, i32) {
    %c0_i32 = arith.constant 0 : i32
    %c0_i32_0 = arith.constant 0 : i32
    %c0_i32_1 = arith.constant 0 : i32
    return %c0_i32, %c0_i32_0 : i32, i32
  }
  func.func @transform_3(%arg0: i32) -> (i32, i32) {
    %c0_i32 = arith.constant 0 : i32
    %c0_i32_0 = arith.constant 0 : i32
    %c0_i32_1 = arith.constant 0 : i32
    return %c0_i32, %c0_i32_0 : i32, i32
  }
  func.func @transform_4(%arg0: i32) -> (i32, i32) {
    %c0_i32 = arith.constant 0 : i32
    %c0_i32_0 = arith.constant 0 : i32
    %c0_i32_1 = arith.constant 0 : i32
    return %c0_i32, %c0_i32_0 : i32, i32
  }
  func.func @transform_5(%arg0: i32) -> (i32, i32) {
    %c0_i32 = arith.constant 0 : i32
    %c0_i32_0 = arith.constant 0 : i32
    %c0_i32_1 = arith.constant 0 : i32
    return %c0_i32, %c0_i32_0 : i32, i32
  }
}

</mosaic_0001>

<llo_original>
// kernel: tpu_custom_call.1
$region0: #{tpu_custom_call.1}
  #allocation0 [shape = 'u32[]', space=smem, size = 0x4, offset = 0x4, fixed_abs, tag = 'smem constant byte address 0x4 - core index']
  #allocation1 [shape = 'u32[144,128]{1,0:T(1,128)}', space=vmem, size = 0x12000, scoped, tag = 'internal scratch']
  %s0 = inlined_call_operand.hbm [shape: f32[16,16], index: 0, kind: input, shape index: {}]
  %s1 = inlined_call_operand.hbm [shape: f32[16,16], index: 1, kind: input, shape index: {}]
  %s2 = inlined_call_operand.vmem [shape: f32[1,16], index: 2, kind: input, shape index: {}]
  %s3 = inlined_call_operand.hbm [shape: f32[16,256], index: 3, kind: input, shape index: {}]
  %s4 = inlined_call_operand.vmem [shape: f32[1,256], index: 4, kind: input, shape index: {}]
  %s5 = inlined_call_operand.hbm [shape: f32[16,256], index: 5, kind: output, shape index: {}]
  %s6 = sld [smem:[#allocation0]]
  $region42: #{tpu_custom_call.1} parent=0
    _
  %s8 = ssub.s32 1, %s6
  %s9 = scalar_select 0, %s8, %s6
  $region1: #{tpu_custom_call.1} parent=0
    #allocation2 [shape = 'u8[8192]{0}', space=vmem, size = 0x2000, scoped, tag = 'input window, operand 0, single buffered']
    #allocation3 [shape = 's32[1]{0}', space=sflag, size = 0x4, scoped, tag = 'scoped memory for tpu_custom_call.1']
    #allocation4 [shape = 's32[1]{0}', space=sflag, size = 0x4, scoped, tag = 'scoped memory for tpu_custom_call.1']
    #allocation5 [shape = 'u8[8192]{0}', space=vmem, size = 0x2000, scoped, tag = 'input window, operand 1, single buffered']
    #allocation6 [shape = 's32[1]{0}', space=sflag, size = 0x4, scoped, tag = 'scoped memory for tpu_custom_call.1']
    #allocation7 [shape = 'u8[16384]{0}', space=vmem, size = 0x4000, scoped, tag = 'input window, operand 3, single buffered']
    #allocation8 [shape = 'u8[16384]{0}', space=vmem, size = 0x4000, scoped, tag = 'output window, operand 0, single buffered']
    %10 = vsyncpa [#allocation3], 0
    %11 = vsyncpa [#allocation6], 0
    %12 = vsyncpa [#allocation4], 0
    // Predicated region
    $region2: #{tpu_custom_call.1} parent=1 // pred_check
      _
    $region3: #{tpu_custom_call.1} parent=1 // pred_check_branch
      %14 = sbr.rel (0) target = $region5
    $region4: #{tpu_custom_call.1} parent=1 // pred_region
      %s16 = ssub.s32 256, 256
      %17 = vsyncadd [#allocation3], %s16
      %s18 = sshll.u32 [#allocation2], 4
      %s19 = int_to_ptr.vmem [resolvable:$true] %s18
      %24 = dma.hbm_to_vmem [thread:$0]  %s0, 256, %s19, [#allocation3], 128, 128, 8
    $region5: #{tpu_custom_call.1} parent=1 // pred_fallthru
      _
    // Predicated region
    $region6: #{tpu_custom_call.1} parent=1 // pred_check
      _
    $region7: #{tpu_custom_call.1} parent=1 // pred_check_branch
      %26 = sbr.rel (0) target = $region9
    $region8: #{tpu_custom_call.1} parent=1 // pred_region
      %s28 = ssub.s32 256, 256
      %29 = vsyncadd [#allocation6], %s28
      %s30 = sshll.u32 [#allocation5], 4
      %s31 = int_to_ptr.vmem [resolvable:$true] %s30
      %36 = dma.hbm_to_vmem [thread:$0]  %s1, 256, %s31, [#allocation6], 128, 128, 8
    $region9: #{tpu_custom_call.1} parent=1 // pred_fallthru
      _
    // Predicated region
    $region10: #{tpu_custom_call.1} parent=1 // pred_check
      _
    $region11: #{tpu_custom_call.1} parent=1 // pred_check_branch
      %38 = sbr.rel (0) target = $region13
    $region12: #{tpu_custom_call.1} parent=1 // pred_region
      _
    $region13: #{tpu_custom_call.1} parent=1 // pred_fallthru
      _
    // Predicated region
    $region14: #{tpu_custom_call.1} parent=1 // pred_check
      _
    $region15: #{tpu_custom_call.1} parent=1 // pred_check_branch
      %40 = sbr.rel (0) target = $region17
    $region16: #{tpu_custom_call.1} parent=1 // pred_region
      %s42 = ssub.s32 512, 512
      %43 = vsyncadd [#allocation6], %s42
      %s44 = sshll.u32 [#allocation7], 4
      %s45 = int_to_ptr.vmem [resolvable:$true] %s44
      %50 = dma.hbm_to_vmem [thread:$0]  %s3, 512, %s45, [#allocation6], 256, 256, 16
    $region17: #{tpu_custom_call.1} parent=1 // pred_fallthru
      _
    // Predicated region
    $region18: #{tpu_custom_call.1} parent=1 // pred_check
      _
    $region19: #{tpu_custom_call.1} parent=1 // pred_check_branch
      %52 = sbr.rel (0) target = $region21
    $region20: #{tpu_custom_call.1} parent=1 // pred_region
      _
    $region21: #{tpu_custom_call.1} parent=1 // pred_fallthru
      _
    // Predicated region
    $region22: #{tpu_custom_call.1} parent=1 // pred_check
      _
    $region23: #{tpu_custom_call.1} parent=1 // pred_check_branch
      %54 = sbr.rel (0) target = $region25
    $region24: #{tpu_custom_call.1} parent=1 // pred_region
      %55 = dma.done [#allocation3], 256
    $region25: #{tpu_custom_call.1} parent=1 // pred_fallthru
      _
    // Predicated region
    $region26: #{tpu_custom_call.1} parent=1 // pred_check
      _
    $region27: #{tpu_custom_call.1} parent=1 // pred_check_branch
      %57 = sbr.rel (0) target = $region29
    $region28: #{tpu_custom_call.1} parent=1 // pred_region
      %58 = dma.done [#allocation6], 256
    $region29: #{tpu_custom_call.1} parent=1 // pred_fallthru
      _
    // Predicated region
    $region30: #{tpu_custom_call.1} parent=1 // pred_check
      _
    $region31: #{tpu_custom_call.1} parent=1 // pred_check_branch
      %60 = sbr.rel (0) target = $region33
    $region32: #{tpu_custom_call.1} parent=1 // pred_region
      %61 = dma.done [#allocation6], 512
    $region33: #{tpu_custom_call.1} parent=1 // pred_fallthru
      _
    %v62 = vld [vmem:[#allocation2] sm:$0xff]
    %v63 = vld [vmem:[#allocation2 + $0x8] sm:$0xff]
    %v64 = vld [vmem:[#allocation5] sm:$0xff]
    %v65 = vld [vmem:[#allocation5 + $0x8] sm:$0xff]
    %v66 = vld [vmem:[%s2] sm:$0x1]
    %v68 = vlaneseq
    %v69 = vshrl.u32 %v68, 7
    %v70 = vsub.s32 0, %v69
    %v71 = vrot.slane %v66, %v70
    %vm73 = vcmask 130048
    %v75 = vsel %vm73, %v62, 0
    %v78 = vsel %vm73, %v63, 0
    %80 = vmatprep.subr.mxu0 0.0
    %81 = vmatpush1.msra.mxu0 %v64
    %82 = vmatprep.subr.mxu0 0.0
    %83 = vmatpush1.msra.mxu0 %v65
    %84 = vmatprep.subr.mxu0 0.0
    %85 = vmatpush1.msra.mxu0 0.0
    %86 = vmatprep.subr.mxu0 0.0
    %87 = vmatpush1.msra.mxu0 0.0
    %88 = vmatprep.subr.mxu0 0.0
    %89 = vmatpush1.msra.mxu0 0.0
    %90 = vmatprep.subr.mxu0 0.0
    %91 = vmatpush1.msra.mxu0 0.0
    %92 = vmatprep.subr.mxu0 0.0
    %93 = vmatpush1.msra.mxu0 0.0
    %94 = vmatprep.subr.mxu0 0.0
    %95 = vmatpush1.msra.mxu0 0.0
    %96 = vmatprep.subr.mxu0 0.0
    %97 = vmatpush1.msra.mxu0 0.0
    %98 = vmatprep.subr.mxu0 0.0
    %99 = vmatpush1.msra.mxu0 0.0
    %100 = vmatprep.subr.mxu0 0.0
    %101 = vmatpush1.msra.mxu0 0.0
    %102 = vmatprep.subr.mxu0 0.0
    %103 = vmatpush1.msra.mxu0 0.0
    %104 = vmatprep.subr.mxu0 0.0
    %105 = vmatpush1.msra.mxu0 0.0
    %106 = vmatprep.subr.mxu0 0.0
    %107 = vmatpush1.msra.mxu0 0.0
    %108 = vmatprep.subr.mxu0 0.0
    %109 = vmatpush1.msra.mxu0 0.0
    %110 = vmatprep.subr.mxu0 0.0
    %111 = vmatpush1.msra.mxu0 0.0
    %112 = vmatprep.subr.mxu0 0.0
    %113 = vmatpush1.msra.mxu0 0.0
    %114 = vmatprep.subr.mxu0 0.0
    %115 = vmatpush1.msra.mxu0 0.0
    %116 = vmatprep.subr.mxu0 0.0
    %117 = vmatpush1.msra.mxu0 0.0
    %118 = vmatprep.subr.mxu0 0.0
    %119 = vmatpush1.msra.mxu0 0.0
    %120 = vmatprep.subr.mxu0 0.0
    %121 = vmatpush1.msra.mxu0 0.0
    %122 = vmatprep.subr.mxu0 0.0
    %123 = vmatpush1.msra.mxu0 0.0
    %124 = vmatprep.subr.mxu0 0.0
    %125 = vmatpush1.msra.mxu0 0.0
    %126 = vmatprep.subr.mxu0 0.0
    %127 = vmatpush1.msra.mxu0 0.0
    %128 = vmatprep.subr.mxu0 0.0
    %129 = vmatpush1.msra.mxu0 0.0
    %130 = vmatprep.subr.mxu0 0.0
    %131 = vmatpush1.msra.mxu0 0.0
    %132 = vmatprep.subr.mxu0 0.0
    %133 = vmatpush1.msra.mxu0 0.0
    %134 = vmatprep.subr.mxu0 0.0
    %135 = vmatpush1.msra.mxu0 0.0
    %136 = vmatprep.subr.mxu0 0.0
    %137 = vmatpush1.msra.mxu0 0.0
    %138 = vmatprep.subr.mxu0 0.0
    %139 = vmatpush1.msra.mxu0 0.0
    %140 = vmatprep.subr.mxu0 0.0
    %141 = vmatpush1.msra.mxu0 0.0
    %142 = vmatprep.subr.mxu0 0.0
    %143 = vmatpush1.msra.mxu0 0.0
    %144 = vmatprep.mubr.f32.mxu0 0.0
    %145 = vmatmul.mubr.f32.gmra.mrb[0].mxu0 %v75
    %v146 = vpop.f32.mrb[0].mxu0
    %v147 = vadd.f32 %v71, %v146
    %v148 = vpop.f32.mrb[0].mxu0
    %149 = vmatprep.mubr.f32.mxu0 0.0
    %150 = vmatmul.mubr.f32.gmra.mrb[0].mxu0 %v78
    %v151 = vpop.f32.mrb[0].mxu0
    %v152 = vadd.f32 %v71, %v151
    %v153 = vpop.f32.mrb[0].mxu0
    %154 = vdwg.mxu0
    %v155 = vmax.f32 %v147, 0.0
    %v156 = vmax.f32 %v152, 0.0
    %v157 = vld [vmem:[#allocation7] sm:$0xff]
    %v158 = vld [vmem:[#allocation7 + $0x8] sm:$0xff]
    %v159 = vld [vmem:[#allocation7 + $0x10] sm:$0xff]
    %v160 = vld [vmem:[#allocation7 + $0x18] sm:$0xff]
    %v161 = vld [vmem:[%s4] sm:$0x3]
    %v163 = vlaneseq
    %v164 = vshrl.u32 %v163, 7
    %v165 = vsub.s32 0, %v164
    %v166 = vrot.slane %v161, %v165
    %v167 = vlaneseq
    %v168 = vshrl.u32 %v167, 7
    %v169 = vsub.s32 1, %v168
    %v170 = vrot.slane %v161, %v169
    %v174 = vsel %vm73, %v155, 0
    %v177 = vsel %vm73, %v156, 0
    %179 = vmatprep.subr.mxu0 %v158
    %180 = vmatpush1.msra.mxu0 %v157
    %181 = vmatprep.subr.mxu0 %v160
    %182 = vmatpush1.msra.mxu0 %v159
    %183 = vmatprep.subr.mxu0 0.0
    %184 = vmatpush1.msra.mxu0 0.0
    %185 = vmatprep.subr.mxu0 0.0
    %186 = vmatpush1.msra.mxu0 0.0
    %187 = vmatprep.subr.mxu0 0.0
    %188 = vmatpush1.msra.mxu0 0.0
    %189 = vmatprep.subr.mxu0 0.0
    %190 = vmatpush1.msra.mxu0 0.0
    %191 = vmatprep.subr.mxu0 0.0
    %192 = vmatpush1.msra.mxu0 0.0
    %193 = vmatprep.subr.mxu0 0.0
    %194 = vmatpush1.msra.mxu0 0.0
    %195 = vmatprep.subr.mxu0 0.0
    %196 = vmatpush1.msra.mxu0 0.0
    %197 = vmatprep.subr.mxu0 0.0
    %198 = vmatpush1.msra.mxu0 0.0
    %199 = vmatprep.subr.mxu0 0.0
    %200 = vmatpush1.msra.mxu0 0.0
    %201 = vmatprep.subr.mxu0 0.0
    %202 = vmatpush1.msra.mxu0 0.0
    %203 = vmatprep.subr.mxu0 0.0
    %204 = vmatpush1.msra.mxu0 0.0
    %205 = vmatprep.subr.mxu0 0.0
    %206 = vmatpush1.msra.mxu0 0.0
    %207 = vmatprep.subr.mxu0 0.0
    %208 = vmatpush1.msra.mxu0 0.0
    %209 = vmatprep.subr.mxu0 0.0
    %210 = vmatpush1.msra.mxu0 0.0
    %211 = vmatprep.subr.mxu0 0.0
    %212 = vmatpush1.msra.mxu0 0.0
    %213 = vmatprep.subr.mxu0 0.0
    %214 = vmatpush1.msra.mxu0 0.0
    %215 = vmatprep.subr.mxu0 0.0
    %216 = vmatpush1.msra.mxu0 0.0
    %217 = vmatprep.subr.mxu0 0.0
    %218 = vmatpush1.msra.mxu0 0.0
    %219 = vmatprep.subr.mxu0 0.0
    %220 = vmatpush1.msra.mxu0 0.0
    %221 = vmatprep.subr.mxu0 0.0
    %222 = vmatpush1.msra.mxu0 0.0
    %223 = vmatprep.subr.mxu0 0.0
    %224 = vmatpush1.msra.mxu0 0.0
    %225 = vmatprep.subr.mxu0 0.0
    %226 = vmatpush1.msra.mxu0 0.0
    %227 = vmatprep.subr.mxu0 0.0
    %228 = vmatpush1.msra.mxu0 0.0
    %229 = vmatprep.subr.mxu0 0.0
    %230 = vmatpush1.msra.mxu0 0.0
    %231 = vmatprep.subr.mxu0 0.0
    %232 = vmatpush1.msra.mxu0 0.0
    %233 = vmatprep.subr.mxu0 0.0
    %234 = vmatpush1.msra.mxu0 0.0
    %235 = vmatprep.subr.mxu0 0.0
    %236 = vmatpush1.msra.mxu0 0.0
    %237 = vmatprep.subr.mxu0 0.0
    %238 = vmatpush1.msra.mxu0 0.0
    %239 = vmatprep.subr.mxu0 0.0
    %240 = vmatpush1.msra.mxu0 0.0
    %241 = vmatprep.subr.mxu0 0.0
    %242 = vmatpush1.msra.mxu0 0.0
    %243 = vmatprep.mubr.f32.mxu0 0.0
    %244 = vmatmul.mubr.f32.gmra.mrb[0].mxu0 %v174
    %v245 = vpop.f32.mrb[0].mxu0
    %v246 = vadd.f32 %v166, %v245
    %v247 = vpop.f32.mrb[0].mxu0
    %v248 = vadd.f32 %v170, %v247
    %249 = vmatprep.mubr.f32.mxu0 0.0
    %250 = vmatmul.mubr.f32.gmra.mrb[0].mxu0 %v177
    %v251 = vpop.f32.mrb[0].mxu0
    %v252 = vadd.f32 %v166, %v251
    %v253 = vpop.f32.mrb[0].mxu0
    %v254 = vadd.f32 %v170, %v253
    %255 = vdwg.mxu0
    %256 = vst [vmem:[#allocation8] sm:$0xff] %v246
    %257 = vst [vmem:[#allocation8 + $0x8] sm:$0xff] %v248
    %258 = vst [vmem:[#allocation8 + $0x10] sm:$0xff] %v252
    %259 = vst [vmem:[#allocation8 + $0x18] sm:$0xff] %v254
    // Predicated region
    $region34: #{tpu_custom_call.1} parent=1 // pred_check
      _
    $region35: #{tpu_custom_call.1} parent=1 // pred_check_branch
      %261 = sbr.rel (0) target = $region37
    $region36: #{tpu_custom_call.1} parent=1 // pred_region
      %s263 = ssub.s32 512, 512
      %264 = vsyncadd [#allocation4], %s263
      %s265 = sshll.u32 [#allocation8], 4
      %s266 = int_to_ptr.vmem [resolvable:$true] %s265
      %271 = dma.vmem_to_hbm [thread:$0]  %s266, 512, %s5, [#allocation4], 256, 256, 16
    $region37: #{tpu_custom_call.1} parent=1 // pred_fallthru
      _
    // Predicated region
    $region38: #{tpu_custom_call.1} parent=1 // pred_check
      _
    $region39: #{tpu_custom_call.1} parent=1 // pred_check_branch
      %273 = sbr.rel (0) target = $region41
    $region40: #{tpu_custom_call.1} parent=1 // pred_region
      %274 = dma.done [#allocation4], 512
    $region41: #{tpu_custom_call.1} parent=1 // pred_fallthru
      _
    %275 = vsyncpa [#allocation3], 1
    %276 = vsyncpa [#allocation6], 1
    %277 = vsyncpa [#allocation4], 1

</llo_original>
